<compile_context>
chip_gen: v6e
topology: v6e:2x2x1
jax: 0.10.0
libtpu: 0.0.40
codegen_flags: <defaults>
</compile_context>

<pallas_src>
import numpy as np
import jax
import jax.numpy as jnp
from jax.experimental import pallas as pl
from jax.experimental.pallas import tpu as pltpu

_LANE = 128
_TARGET_BLOCK_BYTES = 8 * 1024 * 1024     # ~8 MiB per block per buffer
_SPLIT_THRESHOLD_BYTES = 2 * 1024 * 1024  # force >=2 blocks above this (v7x megacore)
_VMEM_LIMIT_BYTES = 40 * 1024 * 1024      # 2 in + 2 out x 8 MiB double-buffered + slack


def _hsigmoid_kernel(x_ref, o_ref):
    # relu6(x + 3) * 0.16666667, computed in f32, stored in the I/O dtype.
    x = x_ref[...].astype(jnp.float32)
    y = jnp.clip(x + 3.0, 0.0, 6.0) * 0.16666667
    o_ref[...] = y.astype(o_ref.dtype)


def _round_up(v, m):
    return int(-(-v // m) * m)


def _sublane_for(dtype):
    # 8 sublanes per vreg for 4-byte dtypes, 16 for 2-byte, 32 for 1-byte.
    return max(8, 32 // np.dtype(dtype).itemsize)


def _choose_row_tiling(rows, row_bytes, sublane):
    """Pick (block_rows, n_blocks) for a (rows, cols) array, byte-targeted."""
    total_bytes = rows * row_bytes
    target_rows = max(sublane,
                      (_TARGET_BLOCK_BYTES // row_bytes) // sublane * sublane)
    if rows <= target_rows:
        if total_bytes > _SPLIT_THRESHOLD_BYTES and rows >= 2 * sublane:
            # Mid-sized tensor: >=2 blocks so both v7x TensorCores get work.
            block_rows = _round_up(-(-rows // 2), sublane)
        else:
            return rows, 1                    # single full-extent block
    else:
        block_rows = target_rows
    n_blocks = -(-rows // block_rows)         # partial edge block is fine
    return block_rows, n_blocks


def _run_rowwise(x2, block_rows, block_cols, n_blocks):
    rows, cols = x2.shape
    itemsize = np.dtype(x2.dtype).itemsize
    return pl.pallas_call(
        _hsigmoid_kernel,
        out_shape=jax.ShapeDtypeStruct((rows, cols), x2.dtype),
        grid=(n_blocks,),
        in_specs=[pl.BlockSpec((block_rows, block_cols), lambda i: (i, 0))],
        out_specs=pl.BlockSpec((block_rows, block_cols), lambda i: (i, 0)),
        compiler_params=pltpu.CompilerParams(
            dimension_semantics=("parallel",),
            vmem_limit_bytes=_VMEM_LIMIT_BYTES,
        ),
        cost_estimate=pl.CostEstimate(
            flops=3 * rows * cols,
            transcendentals=0,
            bytes_accessed=2 * rows * cols * itemsize,
        ),
    )(x2)


def hsigmoid_forward(x):
    """Hard-sigmoid relu6(x + 3.0) * 0.16666667 for any shape / float dtype."""
    orig_shape = x.shape
    total = int(np.prod(orig_shape)) if orig_shape else 1
    if total == 0:
        return x
    itemsize = np.dtype(x.dtype).itemsize
    sublane = _sublane_for(x.dtype)

    # Fast path: lane-aligned total -> zero-copy lane-dense (rows, 128) slab,
    # full unmasked 128-wide stores, byte-targeted row tiles.
    if total % _LANE == 0:
        rows = total // _LANE
        x2 = x.reshape(rows, _LANE)
        block_rows, n_blocks = _choose_row_tiling(rows, _LANE * itemsize, sublane)
        out2 = _run_rowwise(x2, block_rows, _LANE, n_blocks)
        return out2.reshape(orig_shape)

    # Ragged path: keep the original trailing dim as the lane dim, collapse the
    # leading dims into rows; no wrapper-side pad or output-slice copies.
    last = orig_shape[-1] if len(orig_shape) >= 1 else 1
    rows = total // last
    row_vmem_bytes = _round_up(last, _LANE) * itemsize     # lane padding in VMEM
    if row_vmem_bytes <= _TARGET_BLOCK_BYTES:
        x2 = x.reshape(rows, last)
        block_rows, n_blocks = _choose_row_tiling(rows, row_vmem_bytes, sublane)
        out2 = _run_rowwise(x2, block_rows, last, n_blocks)
        return out2.reshape(orig_shape)

    # Pathological fallback (huge, non-lane-aligned trailing dim): pad once to
    # a lane multiple, run the fast path, slice the tail off.
    pad_total = _round_up(total, _LANE)
    x_flat = jnp.pad(jnp.ravel(x), (0, pad_total - total))
    rows = pad_total // _LANE
    x2 = x_flat.reshape(rows, _LANE)
    block_rows, n_blocks = _choose_row_tiling(rows, _LANE * itemsize, sublane)
    out2 = _run_rowwise(x2, block_rows, _LANE, n_blocks)
    return out2.reshape(-1)[:total].reshape(orig_shape)


def hsigmoid_reference(x):
    """Pure-JAX reference mirroring the PyTorch forward (math in f32)."""
    y = jnp.clip(x.astype(jnp.float32) + 3.0, 0.0, 6.0) * 0.16666667
    return y.astype(x.dtype)


if __name__ == "__main__":
    key = jax.random.PRNGKey(0)
    k1, k2, k3 = jax.random.split(key, 3)

    # Main test: f32, NCHW shape consistent with how the module is used.
    x = jax.random.normal(k1, (2, 4, 16, 16), dtype=jnp.float32) * 4.0
    out = jax.block_until_ready(hsigmoid_forward(x))
    ref = hsigmoid_reference(x)
    assert out.shape == x.shape and out.dtype == x.dtype
    np.testing.assert_allclose(np.asarray(out), np.asarray(ref),
                               rtol=1e-6, atol=1e-6)

    # bf16 I/O with a ragged shape (exercises the no-pad ragged path).
    xb = (jax.random.normal(k2, (3, 7, 13), dtype=jnp.float32) * 4.0
          ).astype(jnp.bfloat16)
    outb = jax.block_until_ready(hsigmoid_forward(xb))
    refb = hsigmoid_reference(xb)
    assert outb.shape == xb.shape and outb.dtype == jnp.bfloat16
    np.testing.assert_allclose(np.asarray(outb, dtype=np.float32),
                               np.asarray(refb, dtype=np.float32),
                               rtol=1e-2, atol=1e-2)

    # Mid-sized f32 tensor (>2 MiB): exercises the multi-block / megacore path.
    xm = jax.random.normal(k3, (8, 32, 56, 56), dtype=jnp.float32) * 4.0
    outm = jax.block_until_ready(hsigmoid_forward(xm))
    refm = hsigmoid_reference(xm)
    assert outm.shape == xm.shape and outm.dtype == xm.dtype
    np.testing.assert_allclose(np.asarray(outm), np.asarray(refm),
                               rtol=1e-6, atol=1e-6)

    print("KERNEL_OK")
</pallas_src>

<mosaic_0001>
module attributes {stable_mosaic.version = 11 : i64} {
  func.func @_hsigmoid_kernel(%arg0: i32, %arg1: memref<16x128xf32, #tpu.memory_space<vmem>>, %arg2: memref<16x128xf32, #tpu.memory_space<vmem>>) attributes {dimension_semantics = [#tpu.dimension_semantics<parallel>], iteration_bounds = array<i64: 1>, scalar_prefetch = 0 : i64, scratch_operands = 0 : i64, tpu.core_type = #tpu.core_type<tc>, window_params = [{transform_indices = @transform_0, window_bounds = array<i64: 16, 128>}, {transform_indices = @transform_1, window_bounds = array<i64: 16, 128>}]} {
    %c0 = arith.constant 0 : index
    %c0_0 = arith.constant 0 : index
    %0 = vector.load %arg1[%c0, %c0_0] : memref<16x128xf32, #tpu.memory_space<vmem>>, vector<16x128xf32>
    %cst = arith.constant 3.000000e+00 : f32
    %1 = vector.broadcast %cst : f32 to vector<16x128xf32>
    %2 = arith.addf %0, %1 : vector<16x128xf32>
    %cst_1 = arith.constant 0.000000e+00 : f32
    %cst_2 = arith.constant 6.000000e+00 : f32
    %3 = vector.broadcast %cst_1 : f32 to vector<16x128xf32>
    %4 = arith.maximumf %3, %2 : vector<16x128xf32>
    %5 = vector.broadcast %cst_2 : f32 to vector<16x128xf32>
    %6 = arith.minimumf %5, %4 : vector<16x128xf32>
    %cst_3 = arith.constant 0.166666672 : f32
    %7 = vector.broadcast %cst_3 : f32 to vector<16x128xf32>
    %8 = arith.mulf %6, %7 : vector<16x128xf32>
    %c0_4 = arith.constant 0 : index
    %c0_5 = arith.constant 0 : index
    %9 = vector.load %arg2[%c0_4, %c0_5] : memref<16x128xf32, #tpu.memory_space<vmem>>, vector<16x128xf32>
    tpu.vector_store %arg2[%c0_4, %c0_5], %8 {strides = array<i32>} : memref<16x128xf32, #tpu.memory_space<vmem>>, vector<16x128xf32>,
    return
  }
  func.func @transform_0(%arg0: i32) -> (i32, i32) {
    %c0_i32 = arith.constant 0 : i32
    %c0_i32_0 = arith.constant 0 : i32
    return %arg0, %c0_i32 : i32, i32
  }
  func.func @transform_1(%arg0: i32) -> (i32, i32) {
    %c0_i32 = arith.constant 0 : i32
    %c0_i32_0 = arith.constant 0 : i32
    return %arg0, %c0_i32 : i32, i32
  }
}

</mosaic_0001>

<llo_original>
// kernel: tpu_custom_call.1
$region0: #{tpu_custom_call.1}
  #allocation0 [shape = 'u32[]', space=smem, size = 0x4, offset = 0x4, fixed_abs, tag = 'smem constant byte address 0x4 - core index']
  #allocation1 [shape = 'u32[144,128]{1,0:T(1,128)}', space=vmem, size = 0x12000, scoped, tag = 'internal scratch']
  %s0 = inlined_call_operand.hbm [shape: f32[16,128], index: 0, kind: input, shape index: {}]
  %s1 = inlined_call_operand.hbm [shape: f32[16,128], index: 1, kind: output, shape index: {}]
  %s2 = sld [smem:[#allocation0]]
  $region18: #{tpu_custom_call.1} parent=0
    _
  %s4 = ssub.s32 1, %s2
  %s5 = scalar_select 0, %s4, %s2
  $region1: #{tpu_custom_call.1} parent=0
    #allocation2 [shape = 'u8[8192]{0}', space=vmem, size = 0x2000, scoped, tag = 'input window, operand 0, single buffered']
    #allocation3 [shape = 's32[1]{0}', space=sflag, size = 0x4, scoped, tag = 'scoped memory for tpu_custom_call.1']
    #allocation4 [shape = 's32[1]{0}', space=sflag, size = 0x4, scoped, tag = 'scoped memory for tpu_custom_call.1']
    #allocation5 [shape = 'u8[8192]{0}', space=vmem, size = 0x2000, scoped, tag = 'output window, operand 0, single buffered']
    %6 = vsyncpa [#allocation3], 0
    %7 = vsyncpa [#allocation4], 0
    // Predicated region
    $region2: #{tpu_custom_call.1} parent=1 // pred_check
      _
    $region3: #{tpu_custom_call.1} parent=1 // pred_check_branch
      %9 = sbr.rel (0) target = $region5
    $region4: #{tpu_custom_call.1} parent=1 // pred_region
      %s11 = ssub.s32 256, 256
      %12 = vsyncadd [#allocation3], %s11
      %s13 = sshll.u32 [#allocation2], 4
      %s14 = int_to_ptr.vmem [resolvable:$true] %s13
      %19 = dma.hbm_to_vmem [thread:$0]  %s0, 256, %s14, [#allocation3], 128, 128, 8
    $region5: #{tpu_custom_call.1} parent=1 // pred_fallthru
      _
    // Predicated region
    $region6: #{tpu_custom_call.1} parent=1 // pred_check
      _
    $region7: #{tpu_custom_call.1} parent=1 // pred_check_branch
      %21 = sbr.rel (0) target = $region9
    $region8: #{tpu_custom_call.1} parent=1 // pred_region
      %22 = dma.done [#allocation3], 256
    $region9: #{tpu_custom_call.1} parent=1 // pred_fallthru
      _
    %v23 = vld [vmem:[#allocation2] sm:$0xff]
    %v24 = vld [vmem:[#allocation2 + $0x8] sm:$0xff]
    %v25 = vadd.f32 %v23, 3.0
    %v26 = vadd.f32 %v24, 3.0
    %v27 = vmax.f32 %v25, 0.0
    %v28 = vmax.f32 %v26, 0.0
    %v29 = vmin.f32 %v27, 6.0
    %v30 = vmin.f32 %v28, 6.0
    %v31 = vmul.f32 %v29, 0.16666667
    %v32 = vmul.f32 %v30, 0.16666667
    %33 = vst [vmem:[#allocation5] sm:$0xff] %v31
    %34 = vst [vmem:[#allocation5 + $0x8] sm:$0xff] %v32
    // Predicated region
    $region10: #{tpu_custom_call.1} parent=1 // pred_check
      _
    $region11: #{tpu_custom_call.1} parent=1 // pred_check_branch
      %36 = sbr.rel (0) target = $region13
    $region12: #{tpu_custom_call.1} parent=1 // pred_region
      %s38 = ssub.s32 256, 256
      %39 = vsyncadd [#allocation4], %s38
      %s40 = sshll.u32 [#allocation5], 4
      %s41 = int_to_ptr.vmem [resolvable:$true] %s40
      %46 = dma.vmem_to_hbm [thread:$0]  %s41, 256, %s1, [#allocation4], 128, 128, 8
    $region13: #{tpu_custom_call.1} parent=1 // pred_fallthru
      _
    // Predicated region
    $region14: #{tpu_custom_call.1} parent=1 // pred_check
      _
    $region15: #{tpu_custom_call.1} parent=1 // pred_check_branch
      %48 = sbr.rel (0) target = $region17
    $region16: #{tpu_custom_call.1} parent=1 // pred_region
      %49 = dma.done [#allocation4], 256
    $region17: #{tpu_custom_call.1} parent=1 // pred_fallthru
      _
    %50 = vsyncpa [#allocation3], 1
    %51 = vsyncpa [#allocation4], 1

</llo_original>
